<compile_context>
chip_gen: v7x
topology: tpu7x:2x2x1
jax: 0.10.0
libtpu: 0.0.40
codegen_flags: <defaults>
</compile_context>

<pallas_src>
import jax
import jax.numpy as jnp
from jax import lax
from jax.experimental import pallas as pl
from jax.experimental.pallas import tpu as pltpu

LANES = 128            # lane-dense slab width
MAX_BLOCK_ROWS = 4096  # 4096 x 128 x 4B = 2 MiB per f32 input block
NUM_PARTIALS = 2       # megacore partial sums (2 TCs on v7x; harmless elsewhere)


def _make_kernel(block_rows, lanes, rows, steps_per_part, acc_rows, needs_mask):
    """Build the reduction kernel with all static config baked in via closure."""

    def kernel(g_ref, m_ref, out_ref):
        p = pl.program_id(0)   # partition (megacore-parallel axis)
        i = pl.program_id(1)   # reduction step within the partition

        @pl.when(i == 0)
        def _init():
            out_ref[...] = jnp.zeros_like(out_ref)

        diff = jnp.abs(
            g_ref[...].astype(jnp.float32) - m_ref[...].astype(jnp.float32)
        )

        if needs_mask:
            # Mask rows past the logical end (ragged last block + overshoot
            # blocks of the partition split). Pure VPU select; NaN/garbage in
            # the unselected branch is harmless.
            row0 = (p * steps_per_part + i) * block_rows
            ridx = row0 + lax.broadcasted_iota(jnp.int32, (block_rows, lanes), 0)
            diff = jnp.where(ridx < rows, diff, 0.0)

        # Fold the block into the resident (acc_rows, lanes) partial-sum block
        # using only VPU adds (sum over the leading, sublane-tiled axis).
        out_ref[...] += jnp.sum(diff.reshape(-1, acc_rows, lanes), axis=0)

    return kernel


def feature_matching_loss(gen_pred: jax.Array, melspectrogram: jax.Array,
                          **batch) -> jax.Array:
    """mean |gen_pred - melspectrogram| computed with a Pallas reduction kernel."""
    assert gen_pred.shape == melspectrogram.shape, "feature shapes must match"
    n = gen_pred.size

    g = gen_pred.reshape(-1)
    m = melspectrogram.reshape(-1)

    n_main = (n // LANES) * LANES

    total = jnp.float32(0.0)

    # Ragged tail (< 128 elements): negligible, handled in plain JAX to avoid
    # any wrapper-side pad (which would copy both full inputs through HBM).
    if n_main < n:
        total = total + jnp.sum(
            jnp.abs(g[n_main:].astype(jnp.float32) - m[n_main:].astype(jnp.float32))
        )

    if n_main > 0:
        rows = n_main // LANES
        g2d = g[:n_main].reshape(rows, LANES)
        m2d = m[:n_main].reshape(rows, LANES)

        # Block size: split rows across the two partitions, sublane-aligned,
        # capped at ~2 MiB per f32 input block.
        if rows < 8:
            block_rows = rows                       # equals full dim -> valid block
        else:
            block_rows = min(MAX_BLOCK_ROWS,
                             ((pl.cdiv(rows, NUM_PARTIALS) + 7) // 8) * 8)

        num_blocks = pl.cdiv(rows, block_rows)
        steps_per_part = pl.cdiv(num_blocks, NUM_PARTIALS)
        acc_rows = 8 if block_rows % 8 == 0 else block_rows
        needs_mask = (NUM_PARTIALS * steps_per_part * block_rows) != rows

        kernel = _make_kernel(block_rows, LANES, rows, steps_per_part,
                              acc_rows, needs_mask)

        # Clamp overshooting logical blocks to the last real block; the
        # in-kernel mask zeroes their contribution.
        def in_idx(p, i):
            return (jnp.minimum(p * steps_per_part + i, num_blocks - 1), 0)

        partials = pl.pallas_call(
            kernel,
            out_shape=jax.ShapeDtypeStruct((NUM_PARTIALS, acc_rows, LANES),
                                           jnp.float32),
            grid_spec=pltpu.PrefetchScalarGridSpec(
                num_scalar_prefetch=0,
                grid=(NUM_PARTIALS, steps_per_part),
                in_specs=[
                    pl.BlockSpec((block_rows, LANES), in_idx),
                    pl.BlockSpec((block_rows, LANES), in_idx),
                ],
                # Resident per-partition partial-sum block (accumulated across
                # the "arbitrary" reduction axis, written back once).
                out_specs=pl.BlockSpec((None, acc_rows, LANES),
                                       lambda p, i: (p, 0, 0)),
            ),
            compiler_params=pltpu.CompilerParams(
                dimension_semantics=("parallel", "arbitrary"),
                vmem_limit_bytes=32 * 1024 * 1024,
            ),
        )(g2d, m2d)

        total = total + jnp.sum(partials)

    return (total / jnp.float32(n)).astype(jnp.float32)


if __name__ == "__main__":
    key = jax.random.PRNGKey(0)
    k1, k2 = jax.random.split(key)

    # Small mel-spectrogram-like features: batch=2, n_mels=16, frames=128.
    gen_pred = jax.random.normal(k1, (2, 16, 128), dtype=jnp.float32)
    melspectrogram = jax.random.normal(k2, (2, 16, 128), dtype=jnp.float32)

    loss = feature_matching_loss(gen_pred, melspectrogram)
    jax.block_until_ready(loss)

    # Reference check (plain JAX) for sanity.
    ref = jnp.mean(jnp.abs(gen_pred - melspectrogram))
    assert jnp.allclose(loss, ref, rtol=1e-5, atol=1e-5), (loss, ref)

    print("KERNEL_OK")
</pallas_src>

<mosaic_0001>
module attributes {stable_mosaic.version = 11 : i64} {
  func.func @kernel(%arg0: i32, %arg1: i32, %arg2: memref<16x128xf32, #tpu.memory_space<vmem>>, %arg3: memref<16x128xf32, #tpu.memory_space<vmem>>, %arg4: memref<1x8x128xf32, #tpu.memory_space<vmem>>) attributes {dimension_semantics = [#tpu.dimension_semantics<parallel>, #tpu.dimension_semantics<arbitrary>], iteration_bounds = array<i64: 2, 1>, scalar_prefetch = 0 : i64, scratch_operands = 0 : i64, tpu.core_type = #tpu.core_type<tc>, window_params = [{transform_indices = @transform_0, window_bounds = array<i64: 16, 128>}, {transform_indices = @transform_1, window_bounds = array<i64: 16, 128>}, {transform_indices = @transform_2, window_bounds = array<i64: 1, 8, 128>}]} {
    %c0_i32 = arith.constant 0 : i32
    %0 = arith.cmpi eq, %arg1, %c0_i32 : i32
    %1 = arith.extui %0 : i1 to i32
    %c0_i32_0 = arith.constant 0 : i32
    %2 = arith.cmpi ne, %1, %c0_i32_0 : i32
    scf.if %2 {
      %cst_10 = arith.constant 0.000000e+00 : f32
      %15 = vector.broadcast %cst_10 : f32 to vector<8x128xf32>
      %c0_11 = arith.constant 0 : index
      %c0_12 = arith.constant 0 : index
      %c0_13 = arith.constant 0 : index
      %16 = vector.load %arg4[%c0_11, %c0_12, %c0_13] : memref<1x8x128xf32, #tpu.memory_space<vmem>>, vector<1x8x128xf32>
      %17 = vector.shape_cast %16 : vector<1x8x128xf32> to vector<8x128xf32>
      %18 = vector.shape_cast %15 : vector<8x128xf32> to vector<1x8x128xf32>
      tpu.vector_store %arg4[%c0_11, %c0_12, %c0_13], %18 {strides = array<i32>} : memref<1x8x128xf32, #tpu.memory_space<vmem>>, vector<1x8x128xf32>,
    } else {
    }
    %c0 = arith.constant 0 : index
    %c0_1 = arith.constant 0 : index
    %3 = vector.load %arg2[%c0, %c0_1] : memref<16x128xf32, #tpu.memory_space<vmem>>, vector<16x128xf32>
    %c0_2 = arith.constant 0 : index
    %c0_3 = arith.constant 0 : index
    %4 = vector.load %arg3[%c0_2, %c0_3] : memref<16x128xf32, #tpu.memory_space<vmem>>, vector<16x128xf32>
    %5 = arith.subf %3, %4 : vector<16x128xf32>
    %6 = math.absf %5 : vector<16x128xf32>
    %c0_4 = arith.constant 0 : index
    %c0_5 = arith.constant 0 : index
    %c0_6 = arith.constant 0 : index
    %7 = vector.load %arg4[%c0_4, %c0_5, %c0_6] : memref<1x8x128xf32, #tpu.memory_space<vmem>>, vector<1x8x128xf32>
    %8 = vector.shape_cast %7 : vector<1x8x128xf32> to vector<8x128xf32>
    %9 = vector.shape_cast %6 : vector<16x128xf32> to vector<2x8x128xf32>
    %cst = arith.constant dense<0.000000e+00> : vector<8x128xf32>
    %10 = vector.multi_reduction <add>, %9, %cst [0] : vector<2x8x128xf32> to vector<8x128xf32>
    %11 = arith.addf %8, %10 : vector<8x128xf32>
    %c0_7 = arith.constant 0 : index
    %c0_8 = arith.constant 0 : index
    %c0_9 = arith.constant 0 : index
    %12 = vector.load %arg4[%c0_7, %c0_8, %c0_9] : memref<1x8x128xf32, #tpu.memory_space<vmem>>, vector<1x8x128xf32>
    %13 = vector.shape_cast %12 : vector<1x8x128xf32> to vector<8x128xf32>
    %14 = vector.shape_cast %11 : vector<8x128xf32> to vector<1x8x128xf32>
    tpu.vector_store %arg4[%c0_7, %c0_8, %c0_9], %14 {strides = array<i32>} : memref<1x8x128xf32, #tpu.memory_space<vmem>>, vector<1x8x128xf32>,
    return
  }
  func.func @transform_0(%arg0: i32, %arg1: i32) -> (i32, i32) {
    %c1_i32 = arith.constant 1 : i32
    %0 = arith.muli %arg0, %c1_i32 : i32
    %1 = arith.addi %0, %arg1 : i32
    %c1_i32_0 = arith.constant 1 : i32
    %2 = arith.minsi %1, %c1_i32_0 : i32
    %c0_i32 = arith.constant 0 : i32
    %c0_i32_1 = arith.constant 0 : i32
    return %2, %c0_i32 : i32, i32
  }
  func.func @transform_1(%arg0: i32, %arg1: i32) -> (i32, i32) {
    %c1_i32 = arith.constant 1 : i32
    %0 = arith.muli %arg0, %c1_i32 : i32
    %1 = arith.addi %0, %arg1 : i32
    %c1_i32_0 = arith.constant 1 : i32
    %2 = arith.minsi %1, %c1_i32_0 : i32
    %c0_i32 = arith.constant 0 : i32
    %c0_i32_1 = arith.constant 0 : i32
    return %2, %c0_i32 : i32, i32
  }
  func.func @transform_2(%arg0: i32, %arg1: i32) -> (i32, i32, i32) {
    %c0_i32 = arith.constant 0 : i32
    %c0_i32_0 = arith.constant 0 : i32
    %c0_i32_1 = arith.constant 0 : i32
    return %arg0, %c0_i32, %c0_i32_0 : i32, i32, i32
  }
}

</mosaic_0001>

<llo_original>
// kernel: tpu_custom_call.1
$region0: #{tpu_custom_call.1}
  #allocation0 [shape = 'u32[]', space=smem, size = 0x4, offset = 0x4, fixed_abs, tag = 'smem constant byte address 0x4 - core index']
  #allocation1 [shape = 'u32[144,128]{1,0:T(1,128)}', space=vmem, size = 0x12000, scoped, tag = 'internal scratch']
  %s0 = inlined_call_operand.hbm [shape: f32[32,128], index: 0, kind: input, shape index: {}]
  %s1 = inlined_call_operand.hbm [shape: f32[32,128], index: 1, kind: input, shape index: {}]
  %s2 = inlined_call_operand.hbm [shape: f32[2,8,128], index: 2, kind: output, shape index: {}]
  %s3 = sld [smem:[#allocation0]]
  $region53: #{tpu_custom_call.1} parent=0
    _
  %s5 = ssub.s32 1, %s3
  %s6 = scalar_select 0, %s5, %s3
  $region1: #{tpu_custom_call.1} parent=0
    #allocation2 [shape = 'u8[16384]{0}', space=vmem, size = 0x4000, scoped, tag = 'input window, operand 0']
    #allocation3 [shape = 's32[2]{0}', space=sflag, size = 0x8, scoped, tag = 'scoped memory for tpu_custom_call.1']
    #allocation4 [shape = 's32[2]{0}', space=sflag, size = 0x8, scoped, tag = 'scoped memory for tpu_custom_call.1']
    #allocation5 [shape = 'u8[16384]{0}', space=vmem, size = 0x4000, scoped, tag = 'input window, operand 1']
    #allocation6 [shape = 's32[2]{0}', space=sflag, size = 0x8, scoped, tag = 'scoped memory for tpu_custom_call.1']
    #allocation7 [shape = 'u8[8192]{0}', space=vmem, size = 0x2000, scoped, tag = 'output window, operand 0']
    %7 = vsyncpa [#allocation3], 0
    %s8 = scalar_lea.sflag [#allocation3], 1
    %9 = vsyncpa %s8, 0
    %10 = vsyncpa [#allocation6], 0
    %s11 = scalar_lea.sflag [#allocation6], 1
    %12 = vsyncpa %s11, 0
    %13 = vsyncpa [#allocation4], 0
    %s14 = scalar_lea.sflag [#allocation4], 1
    %15 = vsyncpa %s14, 0
    loop: start=0, step=1, limit=4
    $region2: #{tpu_custom_call.1} parent=1 // loop_pre_header
      _
    $region3: #{tpu_custom_call.1} parent=1 // loop_header
      %s17 = sphi 0, %s21
      %p18 = scmp.ge.s32.totalorder %s17, 4
      %s24 = sphi 0, %s36
      %s25 = sphi 0, %s32
      %s26 = sphi 0, %s24
      %s27 = sphi 0, %s25
      %s28 = sphi 0, %s26
      %s29 = sphi 0, %s27
      %s45 = sphi 0, %s47
      %s48 = sphi 0, %s45
      %s49 = sphi 0, %s48
      %s65 = sphi 0, %s49
      %s77 = sphi 0, %s79
      %s80 = sphi 0, %s77
      %s81 = sphi 0, %s80
      %s97 = sphi 0, %s81
      %s103 = sphi 0, %s105
      %s106 = sphi 0, %s103
      %s107 = sphi 0, %s106
      %s123 = sphi 0, %s107
    $region4: #{tpu_custom_call.1} parent=1 // loop_header_branch
      %20 = sbr.rel (%p18) target = $region8
    $region5: #{tpu_custom_call.1} parent=1 // loop_body
      %s22 = ssub.s32 %s17, 1
      %s23 = ssub.s32 %s17, 2
      %s30 = sadd.s32 1, %s25
      %p31 = scmp.ge.s32.totalorder %s30, 1
      %s32 = scalar_select %p31, 0, %s30
      %s33 = sadd.s32 1, %s24
      %s34 = scalar_select %p31, %s33, %s24
      %p35 = scmp.ge.s32.totalorder %s34, 2
      %s36 = scalar_select %p35, 0, %s34
      %s37 = sadd.s32 %s24, %s25
      %p38 = scmp.lt.s32.totalorder %s37, 1
      %s39 = scalar_select %p38, %s37, 1
      %s40 = sadd.s32 %s36, %s32
      %p41 = scmp.lt.s32.totalorder %s40, 1
      %s42 = scalar_select %p41, %s40, 1
      %s43 = ssub.s32 %s39, %s42
      %p44 = scmp.eq.s32.totalorder %s43, 0
      %s46 = sadd.s32 %s45, 1
      %s47 = scalar_select %p44, %s45, %s46
      %p50 = pneg %p44
      %p51 = scmp.eq.s32.totalorder %s17, 1
      %p52 = por %p50, %p51
      %p53 = scmp.ne.s32.totalorder %s45, %s48
      %p54 = scmp.eq.s32.totalorder %s17, 0
      %p55 = por %p53, %p54
      %p56 = scmp.ne.s32.totalorder %s45, %s48
      %p57 = scmp.eq.s32.totalorder %s22, 1
      %p58 = por %p56, %p57
      %p59 = scmp.ne.s32.totalorder %s48, %s49
      %p60 = scmp.eq.s32.totalorder %s22, 0
      %p61 = por %p59, %p60
      %p62 = scmp.ne.s32.totalorder %s48, %s49
      %p63 = scmp.eq.s32.totalorder %s23, 1
      %p64 = por %p62, %p63
      %p66 = scmp.ne.s32.totalorder %s49, %s65
      %p67 = scmp.eq.s32.totalorder %s23, 0
      %p68 = por %p66, %p67
      %s69 = sadd.s32 %s24, %s25
      %p70 = scmp.lt.s32.totalorder %s69, 1
      %s71 = scalar_select %p70, %s69, 1
      %s72 = sadd.s32 %s36, %s32
      %p73 = scmp.lt.s32.totalorder %s72, 1
      %s74 = scalar_select %p73, %s72, 1
      %s75 = ssub.s32 %s71, %s74
      %p76 = scmp.eq.s32.totalorder %s75, 0
      %s78 = sadd.s32 %s77, 1
      %s79 = scalar_select %p76, %s77, %s78
      %p82 = pneg %p76
      %p83 = scmp.eq.s32.totalorder %s17, 1
      %p84 = por %p82, %p83
      %p85 = scmp.ne.s32.totalorder %s77, %s80
      %p86 = scmp.eq.s32.totalorder %s17, 0
      %p87 = por %p85, %p86
      %p88 = scmp.ne.s32.totalorder %s77, %s80
      %p89 = scmp.eq.s32.totalorder %s22, 1
      %p90 = por %p88, %p89
      %p91 = scmp.ne.s32.totalorder %s80, %s81
      %p92 = scmp.eq.s32.totalorder %s22, 0
      %p93 = por %p91, %p92
      %p94 = scmp.ne.s32.totalorder %s80, %s81
      %p95 = scmp.eq.s32.totalorder %s23, 1
      %p96 = por %p94, %p95
      %p98 = scmp.ne.s32.totalorder %s81, %s97
      %p99 = scmp.eq.s32.totalorder %s23, 0
      %p100 = por %p98, %p99
      %s101 = ssub.s32 %s24, %s36
      %p102 = scmp.eq.s32.totalorder %s101, 0
      %s104 = sadd.s32 %s103, 1
      %s105 = scalar_select %p102, %s103, %s104
      %p108 = pneg %p102
      %p109 = scmp.eq.s32.totalorder %s17, 1
      %p110 = por %p108, %p109
      %p111 = scmp.ne.s32.totalorder %s103, %s106
      %p112 = scmp.eq.s32.totalorder %s17, 0
      %p113 = por %p111, %p112
      %p114 = scmp.ne.s32.totalorder %s103, %s106
      %p115 = scmp.eq.s32.totalorder %s22, 1
      %p116 = por %p114, %p115
      %p117 = scmp.ne.s32.totalorder %s106, %s107
      %p118 = scmp.eq.s32.totalorder %s22, 0
      %p119 = por %p117, %p118
      %p120 = scmp.ne.s32.totalorder %s106, %s107
      %p121 = scmp.eq.s32.totalorder %s23, 1
      %p122 = por %p120, %p121
      %p124 = scmp.ne.s32.totalorder %s107, %s123
      %p125 = scmp.eq.s32.totalorder %s23, 0
      %p126 = por %p124, %p125
      %p127 = scmp.le.s32.totalorder 1, %s17
      %p128 = scmp.lt.s32.totalorder %s17, 3
      %p129 = pnand %p127, %p128
      %p130 = pneg %p129
      // Predicated region
      $region9: #{tpu_custom_call.1} parent=5 // pred_check
        _
      $region10: #{tpu_custom_call.1} parent=5 // pred_check_branch
        %132 = sbr.rel (%p129) target = $region12
      $region11: #{tpu_custom_call.1} parent=5 // pred_region
        %s133 = ssub.s32 %s17, 1
      $region12: #{tpu_custom_call.1} parent=5 // pred_fallthru
        _
      %p134 = scmp.lt.s32.totalorder %s17, 2
      // Predicated region
      $region13: #{tpu_custom_call.1} parent=5 // pred_check
        %p135 = pneg %p134
      $region14: #{tpu_custom_call.1} parent=5 // pred_check_branch
        %137 = sbr.rel (%p135) target = $region16
      $region15: #{tpu_custom_call.1} parent=5 // pred_region
        // Predicated region
        $region17: #{tpu_custom_call.1} parent=15 // pred_check
          %p138 = pneg %p55
        $region18: #{tpu_custom_call.1} parent=15 // pred_check_branch
          %140 = sbr.rel (%p138) target = $region20
        $region19: #{tpu_custom_call.1} parent=15 // pred_region
          %s141 = sand.u32 %s45, 1
          %s142 = scalar_lea.sflag [#allocation3], %s141
          %s143 = sand.u32 %s45, 1
          %s144 = smul.addr %s143, 16
          %s145 = scalar_lea.vmem [#allocation2], %s144
          %s146 = sadd.s32 %s24, %s25
          %p147 = scmp.lt.s32.totalorder %s146, 1
          %s148 = scalar_select %p147, %s146, 1
          %s149 = smul.u32 2, %s148
          %s151 = ssub.s32 256, 256
          %152 = vsyncadd %s142, %s151
          %s153 = smul.addr %s149, 128
          %s154 = scalar_lea.hbm %s0, %s153
          %s155 = sshll.u32 %s145, 4
          %s156 = int_to_ptr.vmem [resolvable:$true] %s155
          %161 = dma.hbm_to_vmem [thread:$0]  %s154, 256, %s156, %s142, 128, 128, 8
        $region20: #{tpu_custom_call.1} parent=15 // pred_fallthru
          _
        // Predicated region
        $region21: #{tpu_custom_call.1} parent=15 // pred_check
          %p162 = pneg %p87
        $region22: #{tpu_custom_call.1} parent=15 // pred_check_branch
          %164 = sbr.rel (%p162) target = $region24
        $region23: #{tpu_custom_call.1} parent=15 // pred_region
          %s165 = sand.u32 %s77, 1
          %s166 = scalar_lea.sflag [#allocation6], %s165
          %s167 = sand.u32 %s77, 1
          %s168 = smul.addr %s167, 16
          %s169 = scalar_lea.vmem [#allocation5], %s168
          %s170 = sadd.s32 %s24, %s25
          %p171 = scmp.lt.s32.totalorder %s170, 1
          %s172 = scalar_select %p171, %s170, 1
          %s173 = smul.u32 2, %s172
          %s175 = ssub.s32 256, 256
          %176 = vsyncadd %s166, %s175
          %s177 = smul.addr %s173, 128
          %s178 = scalar_lea.hbm %s1, %s177
          %s179 = sshll.u32 %s169, 4
          %s180 = int_to_ptr.vmem [resolvable:$true] %s179
          %185 = dma.hbm_to_vmem [thread:$0]  %s178, 256, %s180, %s166, 128, 128, 8
        $region24: #{tpu_custom_call.1} parent=15 // pred_fallthru
          _
      $region16: #{tpu_custom_call.1} parent=5 // pred_fallthru
        _
      %p186 = scmp.le.s32.totalorder 1, %s17
      %p187 = scmp.lt.s32.totalorder %s17, 3
      %p188 = pnand %p186, %p187
      %p189 = pneg %p188
      // Predicated region
      $region25: #{tpu_custom_call.1} parent=5 // pred_check
        _
      $region26: #{tpu_custom_call.1} parent=5 // pred_check_branch
        %191 = sbr.rel (%p188) target = $region28
      $region27: #{tpu_custom_call.1} parent=5 // pred_region
        %s192 = ssub.s32 %s17, 1
        %s193 = sand.u32 %s48, 1
        %s194 = scalar_lea.sflag [#allocation3], %s193
        %s195 = sand.u32 %s48, 1
        %s196 = smul.addr %s195, 16
        %s197 = scalar_lea.vmem [#allocation2], %s196
        // Predicated region
        $region29: #{tpu_custom_call.1} parent=27 // pred_check
          %p198 = pneg %p61
        $region30: #{tpu_custom_call.1} parent=27 // pred_check_branch
          %200 = sbr.rel (%p198) target = $region32
        $region31: #{tpu_custom_call.1} parent=27 // pred_region
          %201 = dma.done %s194, 256
        $region32: #{tpu_custom_call.1} parent=27 // pred_fallthru
          _
        %s202 = sand.u32 %s80, 1
        %s203 = scalar_lea.sflag [#allocation6], %s202
        %s204 = sand.u32 %s80, 1
        %s205 = smul.addr %s204, 16
        %s206 = scalar_lea.vmem [#allocation5], %s205
        // Predicated region
        $region33: #{tpu_custom_call.1} parent=27 // pred_check
          %p207 = pneg %p93
        $region34: #{tpu_custom_call.1} parent=27 // pred_check_branch
          %209 = sbr.rel (%p207) target = $region36
        $region35: #{tpu_custom_call.1} parent=27 // pred_region
          %210 = dma.done %s203, 256
        $region36: #{tpu_custom_call.1} parent=27 // pred_fallthru
          _
        %s211 = sand.u32 %s48, 1
        %s212 = scalar_lea.sflag [#allocation3], %s211
        %s213 = sand.u32 %s48, 1
        %s214 = smul.addr %s213, 16
        %s215 = scalar_lea.vmem [#allocation2], %s214
        %p216 = pneg %p61
        %p217 = pneg %p58
        %s218 = sand.u32 %s80, 1
        %s219 = scalar_lea.sflag [#allocation6], %s218
        %s220 = sand.u32 %s80, 1
        %s221 = smul.addr %s220, 16
        %s222 = scalar_lea.vmem [#allocation5], %s221
        %p223 = pneg %p93
        %p224 = pneg %p90
        %p225 = pneg %p119
        %p226 = pneg %p116
        %s227 = sand.u32 %s106, 1
        %s228 = scalar_lea.sflag [#allocation4], %s227
        %s229 = sand.u32 %s106, 1
        %s230 = smul.addr %s229, 8
        %s231 = scalar_lea.vmem [#allocation7], %s230
        %s232 = sadd.s32 %s26, %s27
        %p233 = scmp.lt.s32.totalorder %s232, 1
        %s234 = scalar_select %p233, %s232, 1
        %s235 = smul.u32 2, %s234
        %s236 = sadd.s32 %s26, %s27
        %p237 = scmp.lt.s32.totalorder %s236, 1
        %s238 = scalar_select %p237, %s236, 1
        %s239 = smul.u32 2, %s238
        %p240 = scmp.eq.s32.totalorder %s27, 0
        // Predicated region
        $region37: #{tpu_custom_call.1} parent=27 // pred_check
          %p241 = pneg %p240
        $region38: #{tpu_custom_call.1} parent=27 // pred_check_branch
          %243 = sbr.rel (%p241) target = $region40
        $region39: #{tpu_custom_call.1} parent=27 // pred_region
          %244 = vst [vmem:[%s231] sm:$0xff] 0.0
        $region40: #{tpu_custom_call.1} parent=27 // pred_fallthru
          _
        %v245 = vld [vmem:[%s197] sm:$0xff]
        %v246 = vld [vmem:[%s197 + $0x8] sm:$0xff]
        %v247 = vld [vmem:[%s206] sm:$0xff]
        %v248 = vld [vmem:[%s206 + $0x8] sm:$0xff]
        %v249 = vsub.f32 %v245, %v247
        %v250 = vsub.f32 %v246, %v248
        %v251 = vand.u32 2147483647, %v249
        %v252 = vand.u32 2147483647, %v250
        %v253 = vld [vmem:[%s231] sm:$0xff]
        %v254 = vadd.f32 %v251, %v252
        %v255 = vadd.f32 %v253, %v254
        %256 = vst [vmem:[%s231] sm:$0xff] %v255
        %s257 = sand.u32 %s106, 1
        %s258 = scalar_lea.sflag [#allocation4], %s257
        %s259 = sand.u32 %s106, 1
        %s260 = smul.addr %s259, 8
        %s261 = scalar_lea.vmem [#allocation7], %s260
        // Predicated region
        $region41: #{tpu_custom_call.1} parent=27 // pred_check
          %p262 = pneg %p116
        $region42: #{tpu_custom_call.1} parent=27 // pred_check_branch
          %264 = sbr.rel (%p262) target = $region44
        $region43: #{tpu_custom_call.1} parent=27 // pred_region
          %s266 = ssub.s32 128, 128
          %267 = vsyncadd %s258, %s266
          %s268 = smul.addr %s26, 128
          %s269 = scalar_lea.hbm %s2, %s268
          %s271 = sshll.u32 %s261, 4
          %s272 = int_to_ptr.vmem [resolvable:$true] %s271
          %274 = dma.vmem_to_hbm [thread:$0]  %s272, 128, %s269, %s258
        $region44: #{tpu_custom_call.1} parent=27 // pred_fallthru
          _
      $region28: #{tpu_custom_call.1} parent=5 // pred_fallthru
        _
      %p275 = scmp.le.s32.totalorder 2, %s17
      // Predicated region
      $region45: #{tpu_custom_call.1} parent=5 // pred_check
        %p276 = pneg %p275
      $region46: #{tpu_custom_call.1} parent=5 // pred_check_branch
        %278 = sbr.rel (%p276) target = $region48
      $region47: #{tpu_custom_call.1} parent=5 // pred_region
        %s279 = ssub.s32 %s17, 2
        // Predicated region
        $region49: #{tpu_custom_call.1} parent=47 // pred_check
          %p280 = pneg %p122
        $region50: #{tpu_custom_call.1} parent=47 // pred_check_branch
          %282 = sbr.rel (%p280) target = $region52
        $region51: #{tpu_custom_call.1} parent=47 // pred_region
          %s283 = sand.u32 %s107, 1
          %s284 = scalar_lea.sflag [#allocation4], %s283
          %s285 = sand.u32 %s107, 1
          %s286 = smul.addr %s285, 8
          %s287 = scalar_lea.vmem [#allocation7], %s286
          %288 = dma.done %s284, 128
        $region52: #{tpu_custom_call.1} parent=47 // pred_fallthru
          _
      $region48: #{tpu_custom_call.1} parent=5 // pred_fallthru
        _
    $region6: #{tpu_custom_call.1} parent=1 // loop_footer
      %s21 = sadd.s32 1, %s17
    $region7: #{tpu_custom_call.1} parent=1 // loop_footer_branch
      %16 = sbr.rel target = $region3
    $region8: #{tpu_custom_call.1} parent=1 // loop_exit
      _
    %289 = vsyncpa [#allocation3], 1
    %s290 = scalar_lea.sflag [#allocation3], 1
    %291 = vsyncpa %s290, 1
    %292 = vsyncpa [#allocation6], 1
    %s293 = scalar_lea.sflag [#allocation6], 1
    %294 = vsyncpa %s293, 1
    %295 = vsyncpa [#allocation4], 1
    %s296 = scalar_lea.sflag [#allocation4], 1
    %297 = vsyncpa %s296, 1

</llo_original>
